<compile_context>
chip_gen: v5e
topology: v5e:2x2
jax: 0.10.0
libtpu: 0.0.40
codegen_flags: <defaults>
</compile_context>

<pallas_src>
import functools

import jax
import jax.numpy as jnp
from jax.experimental import pallas as pl
from jax.experimental.pallas import tpu as pltpu


_PARAM_ORDER = ("conv1_w", "conv1_b",
                "conv_h_w", "conv_h_b",
                "conv_w_w", "conv_w_b")


# ----------------------------- Pallas kernel ---------------------------------
def _dablock_core_kernel(y0_ref,
                         w1_ref, b1_ref,
                         wh_ref, bh_ref,
                         ww_ref, bw_ref,
                         ah_ref, aw_ref, *, H, W):
    f32 = jnp.float32
    y0 = y0_ref[...]                                   # (Bblk, H+W, Cin)
    Bb, S, Cin = y0.shape
    mip = w1_ref.shape[1]
    oup = ah_ref.shape[-1]

    # conv1 (1x1): one stacked matmul over all Bblk*(H+W) rows (channels on
    # lanes, tokens on sublanes).  S = H+W and H are kept multiples of 8 in the
    # demo so the reshapes/slices below are layout no-ops.
    # NOTE: default MXU precision; pass precision=HIGHEST here if bit-exact
    # parity with PyTorch f32 is required.
    y = jnp.dot(y0.reshape(Bb * S, Cin), w1_ref[...],
                preferred_element_type=f32) + b1_ref[...]          # (Bb*S, mip)
    y = y.reshape(Bb, S, mip)

    # InstanceNorm2d (affine=False, biased var, eps=1e-5): per-sample,
    # per-channel statistics over the pooled (H+W) spatial extent.
    mu = jnp.mean(y, axis=1, keepdims=True)                        # (Bb, 1, mip)
    var = jnp.mean((y - mu) * (y - mu), axis=1, keepdims=True)
    y = (y - mu) * jax.lax.rsqrt(var + 1e-5)

    # h_swish: x * relu6(x + 3) / 6
    y = y * (jnp.clip(y + 3.0, 0.0, 6.0) * (1.0 / 6.0))

    # split + conv_h / conv_w (1x1) + sigmoid
    t_h = y[:, :H, :].reshape(Bb * H, mip)
    t_w = y[:, H:, :].reshape(Bb * W, mip)
    a_h = jax.nn.sigmoid(
        jnp.dot(t_h, wh_ref[...], preferred_element_type=f32) + bh_ref[...])
    a_w = jax.nn.sigmoid(
        jnp.dot(t_w, ww_ref[...], preferred_element_type=f32) + bw_ref[...])

    ah_ref[...] = a_h.reshape(Bb, H, oup)
    aw_ref[...] = a_w.reshape(Bb, W, oup)


# ------------------------------- wrapper --------------------------------------
def _pick_bblk(B, S, Cin, cap=8, budget_bytes=4 << 20):
    """Largest divisor of B that (a) keeps >=2 grid steps when B >= 2 so both
    v7x TensorCores get work, (b) stays under a per-step VMEM byte budget
    (sized conservatively for v7x's 64 MiB physical VMEM), (c) is <= cap."""
    per_sample = max(S * Cin * 4, 1)
    cap = max(1, min(cap, budget_bytes // per_sample))
    limit = min(cap, B if B == 1 else max(1, B // 2))
    for c in range(limit, 0, -1):
        if B % c == 0:
            return c
    return 1


def _param_spec(p):
    nd = p.ndim
    return pl.BlockSpec(p.shape, lambda i, _nd=nd: (0,) * _nd)


def dablock_forward(x_nchw, params, *, bblk=None):
    """DaBlock forward. x_nchw: (B, Cin, H, W). Returns (B, oup, H, W)."""
    B, Cin, H, W = x_nchw.shape
    oup = params["conv_h_w"].shape[1]
    S = H + W

    # ---- coordinate pooling on NCHW directly (no full-tensor transpose) -----
    x = x_nchw.astype(jnp.float32)
    x_h = jnp.mean(x, axis=3)                                  # (B, Cin, H)
    x_w = jnp.mean(x, axis=2)                                  # (B, Cin, W)
    # Only the tiny pooled tensor gets transposed to channels-last.
    y0 = jnp.transpose(jnp.concatenate([x_h, x_w], axis=2), (0, 2, 1))  # (B,S,Cin)

    if bblk is None:
        bblk = _pick_bblk(B, S, Cin)
    grid = (B // bblk,)

    plist = [params[k].astype(jnp.float32) for k in _PARAM_ORDER]
    kernel = functools.partial(_dablock_core_kernel, H=H, W=W)

    a_h, a_w = pl.pallas_call(
        kernel,
        out_shape=(jax.ShapeDtypeStruct((B, H, oup), jnp.float32),
                   jax.ShapeDtypeStruct((B, W, oup), jnp.float32)),
        grid=grid,
        in_specs=[pl.BlockSpec((bblk, S, Cin), lambda i: (i, 0, 0))]
                 + [_param_spec(p) for p in plist],
        out_specs=(pl.BlockSpec((bblk, H, oup), lambda i: (i, 0, 0)),
                   pl.BlockSpec((bblk, W, oup), lambda i: (i, 0, 0))),
        compiler_params=pltpu.CompilerParams(
            dimension_semantics=("parallel",),
            vmem_limit_bytes=32 * 1024 * 1024),
    )(y0, *plist)

    # Final attention map a_w * a_h, written in NCHW by a single fused XLA
    # broadcast-multiply (this is the one mandatory output pass; the factor
    # transposes are tiny and fuse into it).
    a_h_c = jnp.transpose(a_h, (0, 2, 1))[:, :, :, None]       # (B, oup, H, 1)
    a_w_c = jnp.transpose(a_w, (0, 2, 1))[:, :, None, :]       # (B, oup, 1, W)
    return a_w_c * a_h_c                                       # (B, oup, H, W)


# ----------------------------- pure-JAX reference -----------------------------
def dablock_reference(x, params):
    """NCHW reference mirroring the PyTorch DaBlock forward (f32, HIGHEST)."""
    hp = jax.lax.Precision.HIGHEST
    B, C, H, W = x.shape
    x_h = jnp.mean(x, axis=3, keepdims=True)                    # (B, C, H, 1)
    x_w = jnp.transpose(jnp.mean(x, axis=2, keepdims=True),
                        (0, 1, 3, 2))                           # (B, C, W, 1)
    y = jnp.concatenate([x_h, x_w], axis=2)                     # (B, C, H+W, 1)
    y = (jnp.einsum("bchw,cm->bmhw", y, params["conv1_w"], precision=hp)
         + params["conv1_b"].reshape(1, -1, 1, 1))
    mu = jnp.mean(y, axis=(2, 3), keepdims=True)
    var = jnp.mean((y - mu) ** 2, axis=(2, 3), keepdims=True)
    y = (y - mu) / jnp.sqrt(var + 1e-5)                         # InstanceNorm2d
    y = y * (jnp.clip(y + 3.0, 0.0, 6.0) / 6.0)                 # h_swish
    t_h = y[:, :, :H, :]                                        # (B, mip, H, 1)
    t_w = jnp.transpose(y[:, :, H:, :], (0, 1, 3, 2))           # (B, mip, 1, W)
    a_h = jax.nn.sigmoid(
        jnp.einsum("bmhw,mo->bohw", t_h, params["conv_h_w"], precision=hp)
        + params["conv_h_b"].reshape(1, -1, 1, 1))              # (B, oup, H, 1)
    a_w = jax.nn.sigmoid(
        jnp.einsum("bmhw,mo->bohw", t_w, params["conv_w_w"], precision=hp)
        + params["conv_w_b"].reshape(1, -1, 1, 1))              # (B, oup, 1, W)
    return a_w * a_h                                            # (B, oup, H, W)


def init_params(key, inp, oup, reduction):
    # Weights stored as (in, out); transpose PyTorch (out, in, 1, 1) conv
    # weights when loading real checkpoints.
    mip = reduction
    ks = jax.random.split(key, 6)
    n = lambda k, shape, s=0.1: jax.random.normal(k, shape, jnp.float32) * s
    return {
        "conv1_w": n(ks[0], (inp, mip)),
        "conv1_b": n(ks[1], (1, mip)),
        "conv_h_w": n(ks[2], (mip, oup)),
        "conv_h_b": n(ks[3], (1, oup)),
        "conv_w_w": n(ks[4], (mip, oup)),
        "conv_w_b": n(ks[5], (1, oup)),
    }


if __name__ == "__main__":
    key = jax.random.PRNGKey(0)
    kx, kp = jax.random.split(key)

    B, inp, oup, H, W = 2, 32, 32, 16, 16
    reduction = 64                       # module default: mip = reduction

    x = jax.random.normal(kx, (B, inp, H, W), jnp.float32)      # NCHW input
    params = init_params(kp, inp, oup, reduction)

    fwd = jax.jit(dablock_forward)
    y = jax.block_until_ready(fwd(x, params))
    y_ref = dablock_reference(x, params)

    assert y.shape == (B, oup, H, W)
    assert bool(jnp.all(jnp.isfinite(y)))
    max_err = float(jnp.max(jnp.abs(y - y_ref)))
    # 5e-3 covers worst-case MXU bf16-pass rounding of the in-kernel f32
    # matmuls vs the HIGHEST-precision reference (values are O(1) sigmoids).
    assert max_err < 5e-3, f"mismatch vs reference: {max_err}"
    print("KERNEL_OK")
</pallas_src>

<mosaic_0001>
module attributes {stable_mosaic.version = 11 : i64} {
  func.func @_dablock_core_kernel(%arg0: i32, %arg1: memref<1x32x32xf32, #tpu.memory_space<vmem>>, %arg2: memref<32x64xf32, #tpu.memory_space<vmem>>, %arg3: memref<1x64xf32, #tpu.memory_space<vmem>>, %arg4: memref<64x32xf32, #tpu.memory_space<vmem>>, %arg5: memref<1x32xf32, #tpu.memory_space<vmem>>, %arg6: memref<64x32xf32, #tpu.memory_space<vmem>>, %arg7: memref<1x32xf32, #tpu.memory_space<vmem>>, %arg8: memref<1x16x32xf32, #tpu.memory_space<vmem>>, %arg9: memref<1x16x32xf32, #tpu.memory_space<vmem>>) attributes {dimension_semantics = [#tpu.dimension_semantics<parallel>], iteration_bounds = array<i64: 2>, scalar_prefetch = 0 : i64, scratch_operands = 0 : i64, tpu.core_type = #tpu.core_type<tc>, window_params = [{transform_indices = @transform_0, window_bounds = array<i64: 1, 32, 32>}, {pipeline_mode = #tpu.pipeline_mode<synchronous>, transform_indices = @transform_1, window_bounds = array<i64: 32, 64>}, {pipeline_mode = #tpu.pipeline_mode<synchronous>, transform_indices = @transform_2, window_bounds = array<i64: 1, 64>}, {pipeline_mode = #tpu.pipeline_mode<synchronous>, transform_indices = @transform_3, window_bounds = array<i64: 64, 32>}, {pipeline_mode = #tpu.pipeline_mode<synchronous>, transform_indices = @transform_4, window_bounds = array<i64: 1, 32>}, {pipeline_mode = #tpu.pipeline_mode<synchronous>, transform_indices = @transform_5, window_bounds = array<i64: 64, 32>}, {pipeline_mode = #tpu.pipeline_mode<synchronous>, transform_indices = @transform_6, window_bounds = array<i64: 1, 32>}, {transform_indices = @transform_7, window_bounds = array<i64: 1, 16, 32>}, {transform_indices = @transform_8, window_bounds = array<i64: 1, 16, 32>}]} {
    %c0 = arith.constant 0 : index
    %c0_0 = arith.constant 0 : index
    %c0_1 = arith.constant 0 : index
    %0 = vector.load %arg1[%c0, %c0_0, %c0_1] : memref<1x32x32xf32, #tpu.memory_space<vmem>>, vector<1x32x32xf32>
    %1 = vector.shape_cast %0 : vector<1x32x32xf32> to vector<32x32xf32>
    %c0_2 = arith.constant 0 : index
    %c0_3 = arith.constant 0 : index
    %2 = vector.load %arg2[%c0_2, %c0_3] : memref<32x64xf32, #tpu.memory_space<vmem>>, vector<32x64xf32>
    %cst = arith.constant dense<0.000000e+00> : vector<32x64xf32>
    %3 = tpu.matmul %1, %2, %cst {dimension_numbers = #tpu.dot_dimension_numbers<[1], [0], [0], [1], [0, 0, 1, 1], [], []>} : vector<32x32xf32>, vector<32x64xf32>, vector<32x64xf32> -> vector<32x64xf32>
    %c0_4 = arith.constant 0 : index
    %c0_5 = arith.constant 0 : index
    %4 = vector.load %arg3[%c0_4, %c0_5] : memref<1x64xf32, #tpu.memory_space<vmem>>, vector<1x64xf32>
    %5 = vector.broadcast %4 : vector<1x64xf32> to vector<32x64xf32>
    %6 = arith.addf %3, %5 : vector<32x64xf32>
    %7 = vector.shape_cast %6 : vector<32x64xf32> to vector<1x32x64xf32>
    %cst_6 = arith.constant dense<0.000000e+00> : vector<1x64xf32>
    %8 = vector.multi_reduction <add>, %7, %cst_6 [1] : vector<1x32x64xf32> to vector<1x64xf32>
    %9 = vector.shape_cast %8 : vector<1x64xf32> to vector<1x1x64xf32>
    %cst_7 = arith.constant 3.200000e+01 : f32
    %10 = vector.broadcast %cst_7 : f32 to vector<1x1x64xf32>
    %11 = arith.divf %9, %10 : vector<1x1x64xf32>
    %12 = vector.broadcast %11 : vector<1x1x64xf32> to vector<1x32x64xf32>
    %13 = arith.subf %7, %12 : vector<1x32x64xf32>
    %14 = vector.broadcast %11 : vector<1x1x64xf32> to vector<1x32x64xf32>
    %15 = arith.subf %7, %14 : vector<1x32x64xf32>
    %16 = arith.mulf %13, %15 : vector<1x32x64xf32>
    %cst_8 = arith.constant dense<0.000000e+00> : vector<1x64xf32>
    %17 = vector.multi_reduction <add>, %16, %cst_8 [1] : vector<1x32x64xf32> to vector<1x64xf32>
    %18 = vector.shape_cast %17 : vector<1x64xf32> to vector<1x1x64xf32>
    %cst_9 = arith.constant 3.200000e+01 : f32
    %19 = vector.broadcast %cst_9 : f32 to vector<1x1x64xf32>
    %20 = arith.divf %18, %19 : vector<1x1x64xf32>
    %21 = vector.broadcast %11 : vector<1x1x64xf32> to vector<1x32x64xf32>
    %22 = arith.subf %7, %21 : vector<1x32x64xf32>
    %cst_10 = arith.constant 9.99999974E-6 : f32
    %23 = vector.broadcast %cst_10 : f32 to vector<1x1x64xf32>
    %24 = arith.addf %20, %23 : vector<1x1x64xf32>
    %25 = math.rsqrt %24 : vector<1x1x64xf32>
    %26 = vector.broadcast %25 : vector<1x1x64xf32> to vector<1x32x64xf32>
    %27 = arith.mulf %22, %26 : vector<1x32x64xf32>
    %cst_11 = arith.constant 3.000000e+00 : f32
    %28 = vector.broadcast %cst_11 : f32 to vector<1x32x64xf32>
    %29 = arith.addf %27, %28 : vector<1x32x64xf32>
    %cst_12 = arith.constant 0.000000e+00 : f32
    %cst_13 = arith.constant 6.000000e+00 : f32
    %30 = vector.broadcast %cst_12 : f32 to vector<1x32x64xf32>
    %31 = arith.maximumf %30, %29 : vector<1x32x64xf32>
    %32 = vector.broadcast %cst_13 : f32 to vector<1x32x64xf32>
    %33 = arith.minimumf %32, %31 : vector<1x32x64xf32>
    %cst_14 = arith.constant 0.166666672 : f32
    %34 = vector.broadcast %cst_14 : f32 to vector<1x32x64xf32>
    %35 = arith.mulf %33, %34 : vector<1x32x64xf32>
    %36 = arith.mulf %27, %35 : vector<1x32x64xf32>
    %37 = vector.extract_strided_slice %36 {offsets = [0, 0, 0], sizes = [1, 16, 64], strides = [1, 1, 1]} : vector<1x32x64xf32> to vector<1x16x64xf32>
    %38 = vector.shape_cast %37 : vector<1x16x64xf32> to vector<16x64xf32>
    %39 = vector.extract_strided_slice %36 {offsets = [0, 16, 0], sizes = [1, 16, 64], strides = [1, 1, 1]} : vector<1x32x64xf32> to vector<1x16x64xf32>
    %40 = vector.shape_cast %39 : vector<1x16x64xf32> to vector<16x64xf32>
    %c0_15 = arith.constant 0 : index
    %c0_16 = arith.constant 0 : index
    %41 = vector.load %arg4[%c0_15, %c0_16] : memref<64x32xf32, #tpu.memory_space<vmem>>, vector<64x32xf32>
    %cst_17 = arith.constant dense<0.000000e+00> : vector<16x32xf32>
    %42 = tpu.matmul %38, %41, %cst_17 {dimension_numbers = #tpu.dot_dimension_numbers<[1], [0], [0], [1], [0, 0, 1, 1], [], []>} : vector<16x64xf32>, vector<64x32xf32>, vector<16x32xf32> -> vector<16x32xf32>
    %c0_18 = arith.constant 0 : index
    %c0_19 = arith.constant 0 : index
    %43 = vector.load %arg5[%c0_18, %c0_19] : memref<1x32xf32, #tpu.memory_space<vmem>>, vector<1x32xf32>
    %44 = vector.broadcast %43 : vector<1x32xf32> to vector<16x32xf32>
    %45 = arith.addf %42, %44 : vector<16x32xf32>
    %46 = arith.negf %45 : vector<16x32xf32>
    %47 = math.exp %46 : vector<16x32xf32>
    %cst_20 = arith.constant 1.000000e+00 : f32
    %48 = vector.broadcast %cst_20 : f32 to vector<16x32xf32>
    %49 = arith.addf %48, %47 : vector<16x32xf32>
    %50 = arith.divf %48, %49 : vector<16x32xf32>
    %c0_21 = arith.constant 0 : index
    %c0_22 = arith.constant 0 : index
    %51 = vector.load %arg6[%c0_21, %c0_22] : memref<64x32xf32, #tpu.memory_space<vmem>>, vector<64x32xf32>
    %cst_23 = arith.constant dense<0.000000e+00> : vector<16x32xf32>
    %52 = tpu.matmul %40, %51, %cst_23 {dimension_numbers = #tpu.dot_dimension_numbers<[1], [0], [0], [1], [0, 0, 1, 1], [], []>} : vector<16x64xf32>, vector<64x32xf32>, vector<16x32xf32> -> vector<16x32xf32>
    %c0_24 = arith.constant 0 : index
    %c0_25 = arith.constant 0 : index
    %53 = vector.load %arg7[%c0_24, %c0_25] : memref<1x32xf32, #tpu.memory_space<vmem>>, vector<1x32xf32>
    %54 = vector.broadcast %53 : vector<1x32xf32> to vector<16x32xf32>
    %55 = arith.addf %52, %54 : vector<16x32xf32>
    %56 = arith.negf %55 : vector<16x32xf32>
    %57 = math.exp %56 : vector<16x32xf32>
    %cst_26 = arith.constant 1.000000e+00 : f32
    %58 = vector.broadcast %cst_26 : f32 to vector<16x32xf32>
    %59 = arith.addf %58, %57 : vector<16x32xf32>
    %60 = arith.divf %58, %59 : vector<16x32xf32>
    %61 = vector.shape_cast %50 : vector<16x32xf32> to vector<1x16x32xf32>
    %c0_27 = arith.constant 0 : index
    %c0_28 = arith.constant 0 : index
    %c0_29 = arith.constant 0 : index
    %62 = vector.load %arg8[%c0_27, %c0_28, %c0_29] : memref<1x16x32xf32, #tpu.memory_space<vmem>>, vector<1x16x32xf32>
    tpu.vector_store %arg8[%c0_27, %c0_28, %c0_29], %61 {strides = array<i32>} : memref<1x16x32xf32, #tpu.memory_space<vmem>>, vector<1x16x32xf32>,
    %63 = vector.shape_cast %60 : vector<16x32xf32> to vector<1x16x32xf32>
    %c0_30 = arith.constant 0 : index
    %c0_31 = arith.constant 0 : index
    %c0_32 = arith.constant 0 : index
    %64 = vector.load %arg9[%c0_30, %c0_31, %c0_32] : memref<1x16x32xf32, #tpu.memory_space<vmem>>, vector<1x16x32xf32>
    tpu.vector_store %arg9[%c0_30, %c0_31, %c0_32], %63 {strides = array<i32>} : memref<1x16x32xf32, #tpu.memory_space<vmem>>, vector<1x16x32xf32>,
    return
  }
  func.func @transform_0(%arg0: i32) -> (i32, i32, i32) {
    %c0_i32 = arith.constant 0 : i32
    %c0_i32_0 = arith.constant 0 : i32
    %c0_i32_1 = arith.constant 0 : i32
    return %arg0, %c0_i32, %c0_i32_0 : i32, i32, i32
  }
  func.func @transform_1(%arg0: i32) -> (i32, i32) {
    %c0_i32 = arith.constant 0 : i32
    %c0_i32_0 = arith.constant 0 : i32
    %c0_i32_1 = arith.constant 0 : i32
    return %c0_i32, %c0_i32_0 : i32, i32
  }
  func.func @transform_2(%arg0: i32) -> (i32, i32) {
    %c0_i32 = arith.constant 0 : i32
    %c0_i32_0 = arith.constant 0 : i32
    %c0_i32_1 = arith.constant 0 : i32
    return %c0_i32, %c0_i32_0 : i32, i32
  }
  func.func @transform_3(%arg0: i32) -> (i32, i32) {
    %c0_i32 = arith.constant 0 : i32
    %c0_i32_0 = arith.constant 0 : i32
    %c0_i32_1 = arith.constant 0 : i32
    return %c0_i32, %c0_i32_0 : i32, i32
  }
  func.func @transform_4(%arg0: i32) -> (i32, i32) {
    %c0_i32 = arith.constant 0 : i32
    %c0_i32_0 = arith.constant 0 : i32
    %c0_i32_1 = arith.constant 0 : i32
    return %c0_i32, %c0_i32_0 : i32, i32
  }
  func.func @transform_5(%arg0: i32) -> (i32, i32) {
    %c0_i32 = arith.constant 0 : i32
    %c0_i32_0 = arith.constant 0 : i32
    %c0_i32_1 = arith.constant 0 : i32
    return %c0_i32, %c0_i32_0 : i32, i32
  }
  func.func @transform_6(%arg0: i32) -> (i32, i32) {
    %c0_i32 = arith.constant 0 : i32
    %c0_i32_0 = arith.constant 0 : i32
    %c0_i32_1 = arith.constant 0 : i32
    return %c0_i32, %c0_i32_0 : i32, i32
  }
  func.func @transform_7(%arg0: i32) -> (i32, i32, i32) {
    %c0_i32 = arith.constant 0 : i32
    %c0_i32_0 = arith.constant 0 : i32
    %c0_i32_1 = arith.constant 0 : i32
    return %arg0, %c0_i32, %c0_i32_0 : i32, i32, i32
  }
  func.func @transform_8(%arg0: i32) -> (i32, i32, i32) {
    %c0_i32 = arith.constant 0 : i32
    %c0_i32_0 = arith.constant 0 : i32
    %c0_i32_1 = arith.constant 0 : i32
    return %arg0, %c0_i32, %c0_i32_0 : i32, i32, i32
  }
}

</mosaic_0001>

<llo_original>
// kernel: dablock_forward.1
$region0: #{dablock_forward.1}
  #allocation0 [shape = 'u32[]', space=smem, size = 0x4, offset = 0x4, fixed_abs, tag = 'smem constant byte address 0x4 - core index']
  #allocation1 [shape = 'u32[72,128]{1,0:T(1,128)}', space=vmem, size = 0x9000, scoped, tag = 'internal scratch']
  %s0 = inlined_call_operand.vmem [shape: f32[2,32,32], index: 0, kind: input, shape index: {}]
  %s1 = inlined_call_operand.vmem [shape: f32[32,64], index: 1, kind: input, shape index: {}]
  %s2 = inlined_call_operand.vmem [shape: f32[1,64], index: 2, kind: input, shape index: {}]
  %s3 = inlined_call_operand.vmem [shape: f32[64,32], index: 3, kind: input, shape index: {}]
  %s4 = inlined_call_operand.vmem [shape: f32[1,32], index: 4, kind: input, shape index: {}]
  %s5 = inlined_call_operand.vmem [shape: f32[64,32], index: 5, kind: input, shape index: {}]
  %s6 = inlined_call_operand.vmem [shape: f32[1,32], index: 6, kind: input, shape index: {}]
  %s7 = inlined_call_operand.vmem [shape: f32[2,16,32], index: 7, kind: output, shape index: {0}]
  %s8 = inlined_call_operand.vmem [shape: f32[2,16,32], index: 8, kind: output, shape index: {1}]
  %9 = xla_tuple %s7, %s8
  %s10 = sld [smem:[#allocation0]]
  $region69: #{dablock_forward.1} parent=0
    _
  %s12 = ssub.s32 1, %s10
  %s13 = scalar_select 0, %s12, %s10
  loop: start=0, step=1, limit=4
  $region2: #{dablock_forward.1} parent=0 // loop_pre_header
    _
  $region3: #{dablock_forward.1} parent=0 // loop_header
    %s15 = sphi 0, %s19
    %p16 = scmp.ge.s32.totalorder %s15, 4
    %s25 = sphi 0, %s27
    %s28 = sphi 0, %s25
    %s29 = sphi 0, %s28
    %s45 = sphi 0, %s29
    %s49 = sphi 0, %s49
    %s51 = sphi 0, %s49
    %s52 = sphi 0, %s51
    %s66 = sphi 0, %s52
    %s70 = sphi 0, %s70
    %s72 = sphi 0, %s70
    %s73 = sphi 0, %s72
    %s87 = sphi 0, %s73
    %s91 = sphi 0, %s91
    %s93 = sphi 0, %s91
    %s94 = sphi 0, %s93
    %s108 = sphi 0, %s94
    %s112 = sphi 0, %s112
    %s114 = sphi 0, %s112
    %s115 = sphi 0, %s114
    %s129 = sphi 0, %s115
    %s133 = sphi 0, %s133
    %s135 = sphi 0, %s133
    %s136 = sphi 0, %s135
    %s150 = sphi 0, %s136
    %s154 = sphi 0, %s154
    %s156 = sphi 0, %s154
    %s157 = sphi 0, %s156
    %s171 = sphi 0, %s157
    %s177 = sphi 0, %s179
    %s180 = sphi 0, %s177
    %s181 = sphi 0, %s180
    %s197 = sphi 0, %s181
    %s203 = sphi 0, %s205
    %s206 = sphi 0, %s203
    %s207 = sphi 0, %s206
    %s223 = sphi 0, %s207
  $region4: #{dablock_forward.1} parent=0 // loop_header_branch
    %18 = sbr.rel (%p16) target = $region8
  $region5: #{dablock_forward.1} parent=0 // loop_body
    %s20 = ssub.s32 %s15, 1
    %s21 = ssub.s32 %s15, 2
    %s22 = sadd.s32 %s15, 1
    %s23 = ssub.s32 %s15, %s22
    %p24 = scmp.eq.s32.totalorder %s23, 0
    %s26 = sadd.s32 %s25, 1
    %s27 = scalar_select %p24, %s25, %s26
    %p30 = pneg %p24
    %p31 = scmp.eq.s32.totalorder %s15, 1
    %p32 = por %p30, %p31
    %p33 = scmp.ne.s32.totalorder %s25, %s28
    %p34 = scmp.eq.s32.totalorder %s15, 0
    %p35 = por %p33, %p34
    %p36 = scmp.ne.s32.totalorder %s25, %s28
    %p37 = scmp.eq.s32.totalorder %s20, 1
    %p38 = por %p36, %p37
    %p39 = scmp.ne.s32.totalorder %s28, %s29
    %p40 = scmp.eq.s32.totalorder %s20, 0
    %p41 = por %p39, %p40
    %p42 = scmp.ne.s32.totalorder %s28, %s29
    %p43 = scmp.eq.s32.totalorder %s21, 1
    %p44 = por %p42, %p43
    %p46 = scmp.ne.s32.totalorder %s29, %s45
    %p47 = scmp.eq.s32.totalorder %s21, 0
    %p48 = por %p46, %p47
    %s50 = sadd.s32 %s49, 1
    %p53 = scmp.eq.s32.totalorder %s15, 1
    %p54 = scmp.ne.s32.totalorder %s49, %s51
    %p55 = scmp.eq.s32.totalorder %s15, 0
    %p56 = por %p54, %p55
    %p57 = scmp.ne.s32.totalorder %s49, %s51
    %p58 = scmp.eq.s32.totalorder %s20, 1
    %p59 = por %p57, %p58
    %p60 = scmp.ne.s32.totalorder %s51, %s52
    %p61 = scmp.eq.s32.totalorder %s20, 0
    %p62 = por %p60, %p61
    %p63 = scmp.ne.s32.totalorder %s51, %s52
    %p64 = scmp.eq.s32.totalorder %s21, 1
    %p65 = por %p63, %p64
    %p67 = scmp.ne.s32.totalorder %s52, %s66
    %p68 = scmp.eq.s32.totalorder %s21, 0
    %p69 = por %p67, %p68
    %s71 = sadd.s32 %s70, 1
    %p74 = scmp.eq.s32.totalorder %s15, 1
    %p75 = scmp.ne.s32.totalorder %s70, %s72
    %p76 = scmp.eq.s32.totalorder %s15, 0
    %p77 = por %p75, %p76
    %p78 = scmp.ne.s32.totalorder %s70, %s72
    %p79 = scmp.eq.s32.totalorder %s20, 1
    %p80 = por %p78, %p79
    %p81 = scmp.ne.s32.totalorder %s72, %s73
    %p82 = scmp.eq.s32.totalorder %s20, 0
    %p83 = por %p81, %p82
    %p84 = scmp.ne.s32.totalorder %s72, %s73
    %p85 = scmp.eq.s32.totalorder %s21, 1
    %p86 = por %p84, %p85
    %p88 = scmp.ne.s32.totalorder %s73, %s87
    %p89 = scmp.eq.s32.totalorder %s21, 0
    %p90 = por %p88, %p89
    %s92 = sadd.s32 %s91, 1
    %p95 = scmp.eq.s32.totalorder %s15, 1
    %p96 = scmp.ne.s32.totalorder %s91, %s93
    %p97 = scmp.eq.s32.totalorder %s15, 0
    %p98 = por %p96, %p97
    %p99 = scmp.ne.s32.totalorder %s91, %s93
    %p100 = scmp.eq.s32.totalorder %s20, 1
    %p101 = por %p99, %p100
    %p102 = scmp.ne.s32.totalorder %s93, %s94
    %p103 = scmp.eq.s32.totalorder %s20, 0
    %p104 = por %p102, %p103
    %p105 = scmp.ne.s32.totalorder %s93, %s94
    %p106 = scmp.eq.s32.totalorder %s21, 1
    %p107 = por %p105, %p106
    %p109 = scmp.ne.s32.totalorder %s94, %s108
    %p110 = scmp.eq.s32.totalorder %s21, 0
    %p111 = por %p109, %p110
    %s113 = sadd.s32 %s112, 1
    %p116 = scmp.eq.s32.totalorder %s15, 1
    %p117 = scmp.ne.s32.totalorder %s112, %s114
    %p118 = scmp.eq.s32.totalorder %s15, 0
    %p119 = por %p117, %p118
    %p120 = scmp.ne.s32.totalorder %s112, %s114
    %p121 = scmp.eq.s32.totalorder %s20, 1
    %p122 = por %p120, %p121
    %p123 = scmp.ne.s32.totalorder %s114, %s115
    %p124 = scmp.eq.s32.totalorder %s20, 0
    %p125 = por %p123, %p124
    %p126 = scmp.ne.s32.totalorder %s114, %s115
    %p127 = scmp.eq.s32.totalorder %s21, 1
    %p128 = por %p126, %p127
    %p130 = scmp.ne.s32.totalorder %s115, %s129
    %p131 = scmp.eq.s32.totalorder %s21, 0
    %p132 = por %p130, %p131
    %s134 = sadd.s32 %s133, 1
    %p137 = scmp.eq.s32.totalorder %s15, 1
    %p138 = scmp.ne.s32.totalorder %s133, %s135
    %p139 = scmp.eq.s32.totalorder %s15, 0
    %p140 = por %p138, %p139
    %p141 = scmp.ne.s32.totalorder %s133, %s135
    %p142 = scmp.eq.s32.totalorder %s20, 1
    %p143 = por %p141, %p142
    %p144 = scmp.ne.s32.totalorder %s135, %s136
    %p145 = scmp.eq.s32.totalorder %s20, 0
    %p146 = por %p144, %p145
    %p147 = scmp.ne.s32.totalorder %s135, %s136
    %p148 = scmp.eq.s32.totalorder %s21, 1
    %p149 = por %p147, %p148
    %p151 = scmp.ne.s32.totalorder %s136, %s150
    %p152 = scmp.eq.s32.totalorder %s21, 0
    %p153 = por %p151, %p152
    %s155 = sadd.s32 %s154, 1
    %p158 = scmp.eq.s32.totalorder %s15, 1
    %p159 = scmp.ne.s32.totalorder %s154, %s156
    %p160 = scmp.eq.s32.totalorder %s15, 0
    %p161 = por %p159, %p160
    %p162 = scmp.ne.s32.totalorder %s154, %s156
    %p163 = scmp.eq.s32.totalorder %s20, 1
    %p164 = por %p162, %p163
    %p165 = scmp.ne.s32.totalorder %s156, %s157
    %p166 = scmp.eq.s32.totalorder %s20, 0
    %p167 = por %p165, %p166
    %p168 = scmp.ne.s32.totalorder %s156, %s157
    %p169 = scmp.eq.s32.totalorder %s21, 1
    %p170 = por %p168, %p169
    %p172 = scmp.ne.s32.totalorder %s157, %s171
    %p173 = scmp.eq.s32.totalorder %s21, 0
    %p174 = por %p172, %p173
    %s175 = ssub.s32 %s15, %s22
    %p176 = scmp.eq.s32.totalorder %s175, 0
    %s178 = sadd.s32 %s177, 1
    %s179 = scalar_select %p176, %s177, %s178
    %p182 = pneg %p176
    %p183 = scmp.eq.s32.totalorder %s15, 1
    %p184 = por %p182, %p183
    %p185 = scmp.ne.s32.totalorder %s177, %s180
    %p186 = scmp.eq.s32.totalorder %s15, 0
    %p187 = por %p185, %p186
    %p188 = scmp.ne.s32.totalorder %s177, %s180
    %p189 = scmp.eq.s32.totalorder %s20, 1
    %p190 = por %p188, %p189
    %p191 = scmp.ne.s32.totalorder %s180, %s181
    %p192 = scmp.eq.s32.totalorder %s20, 0
    %p193 = por %p191, %p192
    %p194 = scmp.ne.s32.totalorder %s180, %s181
    %p195 = scmp.eq.s32.totalorder %s21, 1
    %p196 = por %p194, %p195
    %p198 = scmp.ne.s32.totalorder %s181, %s197
    %p199 = scmp.eq.s32.totalorder %s21, 0
    %p200 = por %p198, %p199
    %s201 = ssub.s32 %s15, %s22
    %p202 = scmp.eq.s32.totalorder %s201, 0
    %s204 = sadd.s32 %s203, 1
    %s205 = scalar_select %p202, %s203, %s204
    %p208 = pneg %p202
    %p209 = scmp.eq.s32.totalorder %s15, 1
    %p210 = por %p208, %p209
    %p211 = scmp.ne.s32.totalorder %s203, %s206
    %p212 = scmp.eq.s32.totalorder %s15, 0
    %p213 = por %p211, %p212
    %p214 = scmp.ne.s32.totalorder %s203, %s206
    %p215 = scmp.eq.s32.totalorder %s20, 1
    %p216 = por %p214, %p215
    %p217 = scmp.ne.s32.totalorder %s206, %s207
    %p218 = scmp.eq.s32.totalorder %s20, 0
    %p219 = por %p217, %p218
    %p220 = scmp.ne.s32.totalorder %s206, %s207
    %p221 = scmp.eq.s32.totalorder %s21, 1
    %p222 = por %p220, %p221
    %p224 = scmp.ne.s32.totalorder %s207, %s223
    %p225 = scmp.eq.s32.totalorder %s21, 0
    %p226 = por %p224, %p225
    %p227 = scmp.le.s32.totalorder 1, %s15
    %p228 = scmp.lt.s32.totalorder %s15, 3
    %p229 = pnand %p227, %p228
    %p230 = pneg %p229
    // Predicated region
    $region9: #{dablock_forward.1} parent=5 // pred_check
      _
    $region10: #{dablock_forward.1} parent=5 // pred_check_branch
      %232 = sbr.rel (%p229) target = $region12
    $region11: #{dablock_forward.1} parent=5 // pred_region
      %s233 = ssub.s32 %s15, 1
      // Predicated region
      $region13: #{dablock_forward.1} parent=11 // pred_check
        %p234 = pneg %p62
      $region14: #{dablock_forward.1} parent=11 // pred_check_branch
        %236 = sbr.rel (%p234) target = $region16
      $region15: #{dablock_forward.1} parent=11 // pred_region
        _
      $region16: #{dablock_forward.1} parent=11 // pred_fallthru
        _
      // Predicated region
      $region17: #{dablock_forward.1} parent=11 // pred_check
        %p237 = pneg %p83
      $region18: #{dablock_forward.1} parent=11 // pred_check_branch
        %239 = sbr.rel (%p237) target = $region20
      $region19: #{dablock_forward.1} parent=11 // pred_region
        _
      $region20: #{dablock_forward.1} parent=11 // pred_fallthru
        _
      // Predicated region
      $region21: #{dablock_forward.1} parent=11 // pred_check
        %p240 = pneg %p104
      $region22: #{dablock_forward.1} parent=11 // pred_check_branch
        %242 = sbr.rel (%p240) target = $region24
      $region23: #{dablock_forward.1} parent=11 // pred_region
        _
      $region24: #{dablock_forward.1} parent=11 // pred_fallthru
        _
      // Predicated region
      $region25: #{dablock_forward.1} parent=11 // pred_check
        %p243 = pneg %p125
      $region26: #{dablock_forward.1} parent=11 // pred_check_branch
        %245 = sbr.rel (%p243) target = $region28
      $region27: #{dablock_forward.1} parent=11 // pred_region
        _
      $region28: #{dablock_forward.1} parent=11 // pred_fallthru
        _
      // Predicated region
      $region29: #{dablock_forward.1} parent=11 // pred_check
        %p246 = pneg %p146
      $region30: #{dablock_forward.1} parent=11 // pred_check_branch
        %248 = sbr.rel (%p246) target = $region32
      $region31: #{dablock_forward.1} parent=11 // pred_region
        _
      $region32: #{dablock_forward.1} parent=11 // pred_fallthru
        _
      // Predicated region
      $region33: #{dablock_forward.1} parent=11 // pred_check
        %p249 = pneg %p167
      $region34: #{dablock_forward.1} parent=11 // pred_check_branch
        %251 = sbr.rel (%p249) target = $region36
      $region35: #{dablock_forward.1} parent=11 // pred_region
        _
      $region36: #{dablock_forward.1} parent=11 // pred_fallthru
        _
    $region12: #{dablock_forward.1} parent=5 // pred_fallthru
      _
    %p252 = scmp.lt.s32.totalorder %s15, 2
    // Predicated region
    $region37: #{dablock_forward.1} parent=5 // pred_check
      %p253 = pneg %p252
    $region38: #{dablock_forward.1} parent=5 // pred_check_branch
      %255 = sbr.rel (%p253) target = $region40
    $region39: #{dablock_forward.1} parent=5 // pred_region
      // Predicated region
      $region41: #{dablock_forward.1} parent=39 // pred_check
        %p256 = pneg %p35
      $region42: #{dablock_forward.1} parent=39 // pred_check_branch
        %258 = sbr.rel (%p256) target = $region44
      $region43: #{dablock_forward.1} parent=39 // pred_region
        %p259 = scmp.lt.s32.totalorder %s15, 1
        %s260 = scalar_select %p259, %s15, 1
        %s261 = smul.addr %s260, 4
        %s262 = smul.addr %s261, 8
        %s263 = scalar_lea.vmem %s0, %s262
      $region44: #{dablock_forward.1} parent=39 // pred_fallthru
        _
    $region40: #{dablock_forward.1} parent=5 // pred_fallthru
      _
    %p264 = scmp.le.s32.totalorder 1, %s15
    %p265 = scmp.lt.s32.totalorder %s15, 3
    %p266 = pnand %p264, %p265
    %p267 = pneg %p266
    // Predicated region
    $region45: #{dablock_forward.1} parent=5 // pred_check
      _
    $region46: #{dablock_forward.1} parent=5 // pred_check_branch
      %269 = sbr.rel (%p266) target = $region48
    $region47: #{dablock_forward.1} parent=5 // pred_region
      %s270 = ssub.s32 %s15, 1
      %p271 = scmp.lt.s32.totalorder %s20, 1
      %s272 = scalar_select %p271, %s20, 1
      %s273 = smul.addr %s272, 4
      %s274 = smul.addr %s273, 8
      %s275 = scalar_lea.vmem %s0, %s274
      %p276 = pneg %p41
      %p277 = pneg %p38
      %p278 = pneg %p62
      %p279 = pneg %p59
      %p280 = pneg %p83
      %p281 = pneg %p80
      %p282 = pneg %p104
      %p283 = pneg %p101
      %p284 = pneg %p125
      %p285 = pneg %p122
      %p286 = pneg %p146
      %p287 = pneg %p143
      %p288 = pneg %p167
      %p289 = pneg %p164
      %p290 = pneg %p193
      %p291 = pneg %p190
      %p292 = scmp.lt.s32.totalorder %s20, 1
      %s293 = scalar_select %p292, %s20, 1
      %s294 = smul.addr %s293, 2
      %s295 = smul.addr %s294, 8
      %s296 = scalar_lea.vmem %s7, %s295
      %p297 = pneg %p219
      %p298 = pneg %p216
      %p299 = scmp.lt.s32.totalorder %s20, 1
      %s300 = scalar_select %p299, %s20, 1
      %s301 = smul.addr %s300, 2
      %s302 = smul.addr %s301, 8
      %s303 = scalar_lea.vmem %s8, %s302
      %p304 = scmp.lt.s32.totalorder %s20, 1
      %s305 = scalar_select %p304, %s20, 1
      %s306 = smul.addr %s305, 4
      %s307 = smul.addr %s306, 8
      %s308 = scalar_lea.vmem %s0, %s307
      %p309 = scmp.lt.s32.totalorder %s20, 1
      %s310 = scalar_select %p309, %s20, 1
      %s311 = smul.addr %s310, 2
      %s312 = smul.addr %s311, 8
      %s313 = scalar_lea.vmem %s7, %s312
      %p314 = scmp.lt.s32.totalorder %s20, 1
      %s315 = scalar_select %p314, %s20, 1
      %s316 = smul.addr %s315, 2
      %s317 = smul.addr %s316, 8
      %s318 = scalar_lea.vmem %s8, %s317
      %v319 = vld [vmem:[%s308] sm:$0xff]
      %v320 = vld [vmem:[%s308 + $0x8] sm:$0xff]
      %v321 = vld [vmem:[%s308 + $0x10] sm:$0xff]
      %v322 = vld [vmem:[%s308 + $0x18] sm:$0xff]
      %v323 = vld [vmem:[%s1] sm:$0xff]
      %v324 = vld [vmem:[%s1 + $0x8] sm:$0xff]
      %v325 = vld [vmem:[%s1 + $0x10] sm:$0xff]
      %v326 = vld [vmem:[%s1 + $0x18] sm:$0xff]
      %v327 = vld [vmem:[%s2] sm:$0x1]
      %v329 = vperm.slane %v327, 0
      %vm331 = vcmask 261120
      %v333 = vsel %vm331, %v319, 0
      %v336 = vsel %vm331, %v320, 0
      %v339 = vsel %vm331, %v321, 0
      %v342 = vsel %vm331, %v322, 0
      %344 = vmatpush.msra.mxu0 0.0
      %345 = vmatpush.msra.mxu0 0.0
      %346 = vmatpush.msra.mxu0 0.0
      %347 = vmatpush.msra.mxu0 0.0
      %348 = vmatpush.msra.mxu0 0.0
      %349 = vmatpush.msra.mxu0 0.0
      %350 = vmatpush.msra.mxu0 0.0
      %351 = vmatpush.msra.mxu0 0.0
      %352 = vmatpush.msra.mxu0 0.0
      %353 = vmatpush.msra.mxu0 0.0
      %354 = vmatpush.msra.mxu0 0.0
      %355 = vmatpush.msra.mxu0 0.0
      %356 = vmatpush.msra.mxu0 %v326
      %357 = vmatpush.msra.mxu0 %v325
      %358 = vmatpush.msra.mxu0 %v324
      %359 = vmatpush.msra.mxu0 %v323
      %360 = vmatmul.f32.gmra.mxu0 %v333
      %v361 = vpop.f32.mrf.mxu0
      %v362 = vadd.f32 %v329, %v361
      %363 = vmatmul.f32.gmra.mxu0 %v336
      %v364 = vpop.f32.mrf.mxu0
      %v365 = vadd.f32 %v329, %v364
      %366 = vmatmul.f32.gmra.mxu0 %v339
      %v367 = vpop.f32.mrf.mxu0
      %v368 = vadd.f32 %v329, %v367
      %369 = vmatmul.f32.gmra.mxu0 %v342
      %v370 = vpop.f32.mrf.mxu0
      %v371 = vadd.f32 %v329, %v370
      %372 = vdwg.mxu0
      %vm373 = vcmask 523264
      %v374 = vsel %vm373, %v362, 0.0
      %v375 = vsel %vm373, %v365, 0.0
      %v376 = vadd.f32 %v374, %v375
      %v377 = vsel %vm373, %v368, 0.0
      %v378 = vadd.f32 %v376, %v377
      %v379 = vsel %vm373, %v371, 0.0
      %v380 = vadd.f32 %v378, %v379
      %v381 = vrot.slane %v380, 4
      %v382 = vadd.f32 %v380, %v381
      %v383 = vrot.slane %v382, 2
      %v384 = vadd.f32 %v382, %v383
      %v385 = vrot.slane %v384, 1
      %v386 = vadd.f32 %v384, %v385
      %v387 = vrcp.pop 32.0
      %v388 = vmul.f32 32.0, %v387
      %v389 = vsub.f32 1.0, %v388
      %v390 = vmul.f32 %v387, %v389
      %v391 = vadd.f32 %v387, %v390
      %vm392 = vweird.f32 %v387
      %v393 = vsel %vm392, %v387, %v391
      %v394 = vmul.f32 %v386, %v393
      %v395 = vsub.f32 %v362, %v394
      %v396 = vsub.f32 %v365, %v394
      %v397 = vsub.f32 %v368, %v394
      %v398 = vsub.f32 %v371, %v394
      %v399 = vmul.f32 %v395, %v395
      %v400 = vmul.f32 %v396, %v396
      %v401 = vmul.f32 %v397, %v397
      %v402 = vmul.f32 %v398, %v398
      %v403 = vsel %vm373, %v399, 0.0
      %v404 = vsel %vm373, %v400, 0.0
      %v405 = vadd.f32 %v403, %v404
      %v406 = vsel %vm373, %v401, 0.0
      %v407 = vadd.f32 %v405, %v406
      %v408 = vsel %vm373, %v402, 0.0
      %v409 = vadd.f32 %v407, %v408
      %v410 = vrot.slane %v409, 4
      %v411 = vadd.f32 %v409, %v410
      %v412 = vrot.slane %v411, 2
      %v413 = vadd.f32 %v411, %v412
      %v414 = vrot.slane %v413, 1
      %v415 = vadd.f32 %v413, %v414
      %v416 = vmul.f32 %v415, %v393
      %v417 = vadd.f32 %v416, 1e-05
      %v418 = vrsqrt.pop %v417
      %v419 = vmul.f32 %v418, %v417
      %v420 = vmul.f32 %v419, %v418
      %v421 = vmul.f32 0.5, %v420
      %v422 = vsub.f32 1.5, %v421
      %v423 = vmul.f32 %v418, %v422
      %vm424 = vweird.f32 %v417
      %vm425 = vweird.f32 %v418
      %vm426 = vmor %vm424, %vm425
      %v427 = vsel %vm426, %v418, %v423
      %v428 = vmul.f32 %v395, %v427
      %v429 = vmul.f32 %v396, %v427
      %v430 = vmul.f32 %v397, %v427
      %v431 = vmul.f32 %v398, %v427
      %v432 = vadd.f32 %v428, 3.0
      %v433 = vadd.f32 %v429, 3.0
      %v434 = vadd.f32 %v430, 3.0
      %v435 = vadd.f32 %v431, 3.0
      %v436 = vmax.f32 %v432, 0.0
      %v437 = vmax.f32 %v433, 0.0
      %v438 = vmax.f32 %v434, 0.0
      %v439 = vmax.f32 %v435, 0.0
      %v440 = vmin.f32 %v436, 6.0
      %v441 = vmin.f32 %v437, 6.0
      %v442 = vmin.f32 %v438, 6.0
      %v443 = vmin.f32 %v439, 6.0
      %v444 = vmul.f32 %v440, 0.16666667
      %v445 = vmul.f32 %v441, 0.16666667
      %v446 = vmul.f32 %v442, 0.16666667
      %v447 = vmul.f32 %v443, 0.16666667
      %v448 = vmul.f32 %v428, %v444
      %v449 = vmul.f32 %v429, %v445
      %v450 = vmul.f32 %v430, %v446
      %v451 = vmul.f32 %v431, %v447
      %v452 = vld [vmem:[%s3] sm:$0xff]
      %v453 = vld [vmem:[%s3 + $0x8] sm:$0xff]
      %v454 = vld [vmem:[%s3 + $0x10] sm:$0xff]
      %v455 = vld [vmem:[%s3 + $0x18] sm:$0xff]
      %v456 = vld [vmem:[%s3 + $0x20] sm:$0xff]
      %v457 = vld [vmem:[%s3 + $0x28] sm:$0xff]
      %v458 = vld [vmem:[%s3 + $0x30] sm:$0xff]
      %v459 = vld [vmem:[%s3 + $0x38] sm:$0xff]
      %v460 = vld [vmem:[%s4] sm:$0x1]
      %v462 = vperm.slane %v460, 0
      %v465 = vsel %vm373, %v448, 0
      %v468 = vsel %vm373, %v449, 0
      %470 = vmatpush.msra.mxu0 0.0
      %471 = vmatpush.msra.mxu0 0.0
      %472 = vmatpush.msra.mxu0 0.0
      %473 = vmatpush.msra.mxu0 0.0
      %474 = vmatpush.msra.mxu0 0.0
      %475 = vmatpush.msra.mxu0 0.0
      %476 = vmatpush.msra.mxu0 0.0
      %477 = vmatpush.msra.mxu0 0.0
      %478 = vmatpush.msra.mxu0 %v459
      %479 = vmatpush.msra.mxu0 %v458
      %480 = vmatpush.msra.mxu0 %v457
      %481 = vmatpush.msra.mxu0 %v456
      %482 = vmatpush.msra.mxu0 %v455
      %483 = vmatpush.msra.mxu0 %v454
      %484 = vmatpush.msra.mxu0 %v453
      %485 = vmatpush.msra.mxu0 %v452
      %486 = vmatmul.f32.gmra.mxu0 %v465
      %v487 = vpop.f32.mrf.mxu0
      %v488 = vadd.f32 %v462, %v487
      %489 = vmatmul.f32.gmra.mxu0 %v468
      %v490 = vpop.f32.mrf.mxu0
      %v491 = vadd.f32 %v462, %v490
      %492 = vdwg.mxu0
      %v493 = vxor.u32 %v488, 2147483648
      %v494 = vxor.u32 %v491, 2147483648
      %v495 = vmul.f32 %v493, 1.442695
      %v496 = vpow.pop %v495
      %v497 = vmul.f32 %v494, 1.442695
      %v498 = vpow.pop %v497
      %v499 = vadd.f32 %v496, 1.0
      %v500 = vadd.f32 %v498, 1.0
      %v501 = vrcp.pop %v499
      %v502 = vmul.f32 %v499, %v501
      %v503 = vsub.f32 1.0, %v502
      %v504 = vmul.f32 %v501, %v503
      %v505 = vadd.f32 %v501, %v504
      %vm506 = vweird.f32 %v499
      %vm507 = vweird.f32 %v501
      %vm508 = vmor %vm506, %vm507
      %v509 = vsel %vm508, %v501, %v505
      %v510 = vand.u32 2147483647, %v499
      %vm511 = vcmp.eq.f32.partialorder %v510, 8.507059e+37
      %v512 = vand.u32 %v499, 2147483648
      %v513 = vor.u32 1.1754944e-38, %v512
      %v514 = vsel %vm511, %v513, %v509
      %v515 = vmul.f32 1.0, %v514
      %v516 = vrcp.pop %v500
      %v517 = vmul.f32 %v500, %v516
      %v518 = vsub.f32 1.0, %v517
      %v519 = vmul.f32 %v516, %v518
      %v520 = vadd.f32 %v516, %v519
      %vm521 = vweird.f32 %v500
      %vm522 = vweird.f32 %v516
      %vm523 = vmor %vm521, %vm522
      %v524 = vsel %vm523, %v516, %v520
      %v525 = vand.u32 2147483647, %v500
      %vm526 = vcmp.eq.f32.partialorder %v525, 8.507059e+37
      %v527 = vand.u32 %v500, 2147483648
      %v528 = vor.u32 1.1754944e-38, %v527
      %v529 = vsel %vm526, %v528, %v524
      %v530 = vmul.f32 1.0, %v529
      %v531 = vld [vmem:[%s5] sm:$0xff]
      %v532 = vld [vmem:[%s5 + $0x8] sm:$0xff]
      %v533 = vld [vmem:[%s5 + $0x10] sm:$0xff]
      %v534 = vld [vmem:[%s5 + $0x18] sm:$0xff]
      %v535 = vld [vmem:[%s5 + $0x20] sm:$0xff]
      %v536 = vld [vmem:[%s5 + $0x28] sm:$0xff]
      %v537 = vld [vmem:[%s5 + $0x30] sm:$0xff]
      %v538 = vld [vmem:[%s5 + $0x38] sm:$0xff]
      %v539 = vld [vmem:[%s6] sm:$0x1]
      %v541 = vperm.slane %v539, 0
      %v544 = vsel %vm373, %v450, 0
      %v547 = vsel %vm373, %v451, 0
      %549 = vmatpush.msra.mxu0 0.0
      %550 = vmatpush.msra.mxu0 0.0
      %551 = vmatpush.msra.mxu0 0.0
      %552 = vmatpush.msra.mxu0 0.0
      %553 = vmatpush.msra.mxu0 0.0
      %554 = vmatpush.msra.mxu0 0.0
      %555 = vmatpush.msra.mxu0 0.0
      %556 = vmatpush.msra.mxu0 0.0
      %557 = vmatpush.msra.mxu0 %v538
      %558 = vmatpush.msra.mxu0 %v537
      %559 = vmatpush.msra.mxu0 %v536
      %560 = vmatpush.msra.mxu0 %v535
      %561 = vmatpush.msra.mxu0 %v534
      %562 = vmatpush.msra.mxu0 %v533
      %563 = vmatpush.msra.mxu0 %v532
      %564 = vmatpush.msra.mxu0 %v531
      %565 = vmatmul.f32.gmra.mxu0 %v544
      %v566 = vpop.f32.mrf.mxu0
      %v567 = vadd.f32 %v541, %v566
      %568 = vmatmul.f32.gmra.mxu0 %v547
      %v569 = vpop.f32.mrf.mxu0
      %v570 = vadd.f32 %v541, %v569
      %571 = vdwg.mxu0
      %v572 = vxor.u32 %v567, 2147483648
      %v573 = vxor.u32 %v570, 2147483648
      %v574 = vmul.f32 %v572, 1.442695
      %v575 = vpow.pop %v574
      %v576 = vmul.f32 %v573, 1.442695
      %v577 = vpow.pop %v576
      %v578 = vadd.f32 %v575, 1.0
      %v579 = vadd.f32 %v577, 1.0
      %v580 = vrcp.pop %v578
      %v581 = vmul.f32 %v578, %v580
      %v582 = vsub.f32 1.0, %v581
      %v583 = vmul.f32 %v580, %v582
      %v584 = vadd.f32 %v580, %v583
      %vm585 = vweird.f32 %v578
      %vm586 = vweird.f32 %v580
      %vm587 = vmor %vm585, %vm586
      %v588 = vsel %vm587, %v580, %v584
      %v589 = vand.u32 2147483647, %v578
      %vm590 = vcmp.eq.f32.partialorder %v589, 8.507059e+37
      %v591 = vand.u32 %v578, 2147483648
      %v592 = vor.u32 1.1754944e-38, %v591
      %v593 = vsel %vm590, %v592, %v588
      %v594 = vmul.f32 1.0, %v593
      %v595 = vrcp.pop %v579
      %v596 = vmul.f32 %v579, %v595
      %v597 = vsub.f32 1.0, %v596
      %v598 = vmul.f32 %v595, %v597
      %v599 = vadd.f32 %v595, %v598
      %vm600 = vweird.f32 %v579
      %vm601 = vweird.f32 %v595
      %vm602 = vmor %vm600, %vm601
      %v603 = vsel %vm602, %v595, %v599
      %v604 = vand.u32 2147483647, %v579
      %vm605 = vcmp.eq.f32.partialorder %v604, 8.507059e+37
      %v606 = vand.u32 %v579, 2147483648
      %v607 = vor.u32 1.1754944e-38, %v606
      %v608 = vsel %vm605, %v607, %v603
      %v609 = vmul.f32 1.0, %v608
      %610 = vst.msk [vmem:[%s313] sm:$0xff] %vm331, %v515
      %611 = vst.msk [vmem:[%s313 + $0x8] sm:$0xff] %vm331, %v530
      %612 = vst.msk [vmem:[%s318] sm:$0xff] %vm331, %v594
      %613 = vst.msk [vmem:[%s318 + $0x8] sm:$0xff] %vm331, %v609
      %p614 = scmp.lt.s32.totalorder %s20, 1
      %s615 = scalar_select %p614, %s20, 1
      %s616 = smul.addr %s615, 2
      %s617 = smul.addr %s616, 8
      %s618 = scalar_lea.vmem %s7, %s617
      %p619 = scmp.lt.s32.totalorder %s20, 1
      %s620 = scalar_select %p619, %s20, 1
      %s621 = smul.addr %s620, 2
      %s622 = smul.addr %s621, 8
      %s623 = scalar_lea.vmem %s8, %s622
      // Predicated region
      $region49: #{dablock_forward.1} parent=47 // pred_check
        %p624 = pneg %p190
      $region50: #{dablock_forward.1} parent=47 // pred_check_branch
        %626 = sbr.rel (%p624) target = $region52
      $region51: #{dablock_forward.1} parent=47 // pred_region
        _
      $region52: #{dablock_forward.1} parent=47 // pred_fallthru
        _
      // Predicated region
      $region53: #{dablock_forward.1} parent=47 // pred_check
        %p627 = pneg %p216
      $region54: #{dablock_forward.1} parent=47 // pred_check_branch
        %629 = sbr.rel (%p627) target = $region56
      $region55: #{dablock_forward.1} parent=47 // pred_region
        _
      $region56: #{dablock_forward.1} parent=47 // pred_fallthru
        _
    $region48: #{dablock_forward.1} parent=5 // pred_fallthru
      _
    %p630 = scmp.le.s32.totalorder 2, %s15
    // Predicated region
    $region57: #{dablock_forward.1} parent=5 // pred_check
      %p631 = pneg %p630
    $region58: #{dablock_forward.1} parent=5 // pred_check_branch
      %633 = sbr.rel (%p631) target = $region60
    $region59: #{dablock_forward.1} parent=5 // pred_region
      %s634 = ssub.s32 %s15, 2
      // Predicated region
      $region61: #{dablock_forward.1} parent=59 // pred_check
        %p635 = pneg %p196
      $region62: #{dablock_forward.1} parent=59 // pred_check_branch
        %637 = sbr.rel (%p635) target = $region64
      $region63: #{dablock_forward.1} parent=59 // pred_region
        %p638 = scmp.lt.s32.totalorder %s21, 1
        %s639 = scalar_select %p638, %s21, 1
        %s640 = smul.addr %s639, 2
        %s641 = smul.addr %s640, 8
        %s642 = scalar_lea.vmem %s7, %s641
      $region64: #{dablock_forward.1} parent=59 // pred_fallthru
        _
      // Predicated region
      $region65: #{dablock_forward.1} parent=59 // pred_check
        %p643 = pneg %p222
      $region66: #{dablock_forward.1} parent=59 // pred_check_branch
        %645 = sbr.rel (%p643) target = $region68
      $region67: #{dablock_forward.1} parent=59 // pred_region
        %p646 = scmp.lt.s32.totalorder %s21, 1
        %s647 = scalar_select %p646, %s21, 1
        %s648 = smul.addr %s647, 2
        %s649 = smul.addr %s648, 8
        %s650 = scalar_lea.vmem %s8, %s649
      $region68: #{dablock_forward.1} parent=59 // pred_fallthru
        _
    $region60: #{dablock_forward.1} parent=5 // pred_fallthru
      _
  $region6: #{dablock_forward.1} parent=0 // loop_footer
    %s19 = sadd.s32 1, %s15
  $region7: #{dablock_forward.1} parent=0 // loop_footer_branch
    %14 = sbr.rel target = $region3
  $region8: #{dablock_forward.1} parent=0 // loop_exit
    _

</llo_original>
